<compile_context>
chip_gen: v6e
topology: v6e:2x2x1
jax: 0.10.0
libtpu: 0.0.40
codegen_flags: <defaults>
</compile_context>

<pallas_src>
import jax
import jax.numpy as jnp
import numpy as np
from jax import lax
from jax.experimental import pallas as pl
from jax.experimental.pallas import tpu as pltpu  # noqa: F401

_EPS = 1e-12          # F.normalize default eps (denominator is max(norm, eps))
_EPS2 = _EPS * _EPS   # applied inside the max on the squared norm

# Contract axis 1 of both operands: dot_general(A, B, ...) == A @ B.T, no .T relayout.
_CONTRACT_LAST = (((1,), (1,)), ((), ()))


def _row_l2_normalize(v):
    """v / max(||v||_2, eps) via rsqrt (row-wise, last axis)."""
    sumsq = jnp.sum(v * v, axis=-1, keepdims=True)
    return v * lax.rsqrt(jnp.maximum(sumsq, _EPS2))


def _induced_encoder_kernel(q_ref, x_ref, out_ref):
    q = q_ref[...]                       # (n, d) f32
    x = x_ref[...]                       # (m, d) f32

    qn = _row_l2_normalize(q)            # (n, d)
    xn = _row_l2_normalize(x)            # (m, d)

    # attn = qn @ xn.T  -> (n, m)   (MXU, transpose-free contraction)
    attn = lax.dot_general(qn, xn, _CONTRACT_LAST,
                           preferred_element_type=jnp.float32)

    # Row-wise L2 normalize attn, then out = an @ an.T -> (n, n) (MXU, no .T).
    an = _row_l2_normalize(attn)         # (n, m)
    out_ref[...] = lax.dot_general(an, an, _CONTRACT_LAST,
                                   preferred_element_type=jnp.float32)


def induced_encoder(queries, x):
    """queries: (n, d) float32, x: (m, d) float32 -> (n, n) float32."""
    n, d = queries.shape
    m, _ = x.shape
    # Whole problem fits comfortably in VMEM -> single block, no grid.
    # TODO(synk): if n/m grow large, tile `out` rows with a ("parallel", ...) grid
    # (megacore on v7x) well before n*d + m*d + n*m + n^2 f32 approaches VMEM.
    return pl.pallas_call(
        _induced_encoder_kernel,
        out_shape=jax.ShapeDtypeStruct((n, n), jnp.float32),
        in_specs=[
            pl.BlockSpec((n, d), lambda: (0, 0)),
            pl.BlockSpec((m, d), lambda: (0, 0)),
        ],
        out_specs=pl.BlockSpec((n, n), lambda: (0, 0)),
    )(queries, x)


def _reference(queries, x):
    """Pure-JAX mirror of the PyTorch forward."""
    def l2n(v):
        nrm = jnp.sqrt(jnp.sum(v * v, axis=-1, keepdims=True))
        return v / jnp.maximum(nrm, _EPS)

    attn = l2n(queries) @ l2n(x).T
    attn = l2n(attn)
    return attn @ attn.T


if __name__ == "__main__":
    # Small, deterministic shapes consistent with the module (n learned queries
    # of dim d, a batch of m feature vectors of dim d).
    n, d, m = 128, 256, 16
    key = jax.random.PRNGKey(0)
    kq, kx = jax.random.split(key)
    # Deterministic parameter init, mirroring nn.Parameter(torch.randn(n, d)).
    queries = jax.random.normal(kq, (n, d), dtype=jnp.float32)
    x = jax.random.normal(kx, (m, d), dtype=jnp.float32)

    out = induced_encoder(queries, x)
    out = jax.block_until_ready(out)

    ref = jax.block_until_ready(_reference(queries, x))
    assert out.shape == (n, n)
    np.testing.assert_allclose(np.asarray(out), np.asarray(ref), rtol=1e-5, atol=1e-5)

    print("KERNEL_OK")
</pallas_src>

<mosaic_0001>
module attributes {stable_mosaic.version = 11 : i64} {
  func.func @_induced_encoder_kernel(%arg0: memref<128x256xf32, #tpu.memory_space<vmem>>, %arg1: memref<16x256xf32, #tpu.memory_space<vmem>>, %arg2: memref<128x128xf32, #tpu.memory_space<vmem>>) attributes {dimension_semantics = [], scalar_prefetch = 0 : i64, scratch_operands = 0 : i64, tpu.core_type = #tpu.core_type<tc>} {
    %c0 = arith.constant 0 : index
    %c0_0 = arith.constant 0 : index
    %0 = vector.load %arg0[%c0, %c0_0] : memref<128x256xf32, #tpu.memory_space<vmem>>, vector<128x256xf32>
    %c0_1 = arith.constant 0 : index
    %c0_2 = arith.constant 0 : index
    %1 = vector.load %arg1[%c0_1, %c0_2] : memref<16x256xf32, #tpu.memory_space<vmem>>, vector<16x256xf32>
    %2 = arith.mulf %0, %0 : vector<128x256xf32>
    %cst = arith.constant dense<0.000000e+00> : vector<128xf32>
    %3 = vector.multi_reduction <add>, %2, %cst [1] : vector<128x256xf32> to vector<128xf32>
    %4 = vector.shape_cast %3 : vector<128xf32> to vector<128x1xf32>
    %cst_3 = arith.constant 1.000000e-24 : f32
    %5 = vector.broadcast %cst_3 : f32 to vector<128x1xf32>
    %6 = arith.maximumf %4, %5 : vector<128x1xf32>
    %7 = math.rsqrt %6 : vector<128x1xf32>
    %8 = vector.broadcast %7 : vector<128x1xf32> to vector<128x256xf32>
    %9 = arith.mulf %0, %8 : vector<128x256xf32>
    %10 = arith.mulf %1, %1 : vector<16x256xf32>
    %cst_4 = arith.constant dense<0.000000e+00> : vector<16xf32>
    %11 = vector.multi_reduction <add>, %10, %cst_4 [1] : vector<16x256xf32> to vector<16xf32>
    %12 = vector.shape_cast %11 : vector<16xf32> to vector<16x1xf32>
    %cst_5 = arith.constant 1.000000e-24 : f32
    %13 = vector.broadcast %cst_5 : f32 to vector<16x1xf32>
    %14 = arith.maximumf %12, %13 : vector<16x1xf32>
    %15 = math.rsqrt %14 : vector<16x1xf32>
    %16 = vector.broadcast %15 : vector<16x1xf32> to vector<16x256xf32>
    %17 = arith.mulf %1, %16 : vector<16x256xf32>
    %cst_6 = arith.constant dense<0.000000e+00> : vector<128x16xf32>
    %18 = tpu.matmul %9, %17, %cst_6 {dimension_numbers = #tpu.dot_dimension_numbers<[1], [1], [0], [0], [0, 0, 1, 0], [], []>} : vector<128x256xf32>, vector<16x256xf32>, vector<128x16xf32> -> vector<128x16xf32>
    %19 = arith.mulf %18, %18 : vector<128x16xf32>
    %cst_7 = arith.constant dense<0.000000e+00> : vector<128xf32>
    %20 = vector.multi_reduction <add>, %19, %cst_7 [1] : vector<128x16xf32> to vector<128xf32>
    %21 = vector.shape_cast %20 : vector<128xf32> to vector<128x1xf32>
    %cst_8 = arith.constant 1.000000e-24 : f32
    %22 = vector.broadcast %cst_8 : f32 to vector<128x1xf32>
    %23 = arith.maximumf %21, %22 : vector<128x1xf32>
    %24 = math.rsqrt %23 : vector<128x1xf32>
    %25 = vector.broadcast %24 : vector<128x1xf32> to vector<128x16xf32>
    %26 = arith.mulf %18, %25 : vector<128x16xf32>
    %cst_9 = arith.constant dense<0.000000e+00> : vector<128x128xf32>
    %27 = tpu.matmul %26, %26, %cst_9 {dimension_numbers = #tpu.dot_dimension_numbers<[1], [1], [0], [0], [0, 0, 1, 0], [], []>} : vector<128x16xf32>, vector<128x16xf32>, vector<128x128xf32> -> vector<128x128xf32>
    %c0_10 = arith.constant 0 : index
    %c0_11 = arith.constant 0 : index
    %28 = vector.load %arg2[%c0_10, %c0_11] : memref<128x128xf32, #tpu.memory_space<vmem>>, vector<128x128xf32>
    tpu.vector_store %arg2[%c0_10, %c0_11], %27 {strides = array<i32>} : memref<128x128xf32, #tpu.memory_space<vmem>>, vector<128x128xf32>,
    return
  }
}

</mosaic_0001>

<llo_original>
// kernel: tpu_custom_call.1
$region0: #{tpu_custom_call.1}
  #allocation0 [shape = 'u32[]', space=smem, size = 0x4, offset = 0x4, fixed_abs, tag = 'smem constant byte address 0x4 - core index']
  #allocation1 [shape = 'u32[144,128]{1,0:T(1,128)}', space=vmem, size = 0x12000, scoped, tag = 'internal scratch']
  %s0 = inlined_call_operand.hbm [shape: f32[128,256], index: 0, kind: input, shape index: {}]
  %s1 = inlined_call_operand.hbm [shape: f32[16,256], index: 1, kind: input, shape index: {}]
  %s2 = inlined_call_operand.hbm [shape: f32[128,128], index: 2, kind: output, shape index: {}]
  %s3 = sld [smem:[#allocation0]]
  $region26: #{tpu_custom_call.1} parent=0
    _
  %s5 = ssub.s32 1, %s3
  %s6 = scalar_select 0, %s5, %s3
  $region1: #{tpu_custom_call.1} parent=0
    #allocation2 [shape = 'u8[131072]{0}', space=vmem, size = 0x20000, scoped, tag = 'input window, operand 0, single buffered']
    #allocation3 [shape = 's32[1]{0}', space=sflag, size = 0x4, scoped, tag = 'scoped memory for tpu_custom_call.1']
    #allocation4 [shape = 's32[1]{0}', space=sflag, size = 0x4, scoped, tag = 'scoped memory for tpu_custom_call.1']
    #allocation5 [shape = 'u8[16384]{0}', space=vmem, size = 0x4000, scoped, tag = 'input window, operand 1, single buffered']
    #allocation6 [shape = 's32[1]{0}', space=sflag, size = 0x4, scoped, tag = 'scoped memory for tpu_custom_call.1']
    #allocation7 [shape = 'u8[65536]{0}', space=vmem, size = 0x10000, scoped, tag = 'output window, operand 0, single buffered']
    %7 = vsyncpa [#allocation3], 0
    %8 = vsyncpa [#allocation6], 0
    %9 = vsyncpa [#allocation4], 0
    // Predicated region
    $region2: #{tpu_custom_call.1} parent=1 // pred_check
      _
    $region3: #{tpu_custom_call.1} parent=1 // pred_check_branch
      %11 = sbr.rel (0) target = $region5
    $region4: #{tpu_custom_call.1} parent=1 // pred_region
      %s13 = ssub.s32 4096, 4096
      %14 = vsyncadd [#allocation3], %s13
      %s15 = sshll.u32 [#allocation2], 4
      %s16 = int_to_ptr.vmem [resolvable:$true] %s15
      %21 = dma.hbm_to_vmem [thread:$0]  %s0, 4096, %s16, [#allocation3], 256, 256, 16
    $region5: #{tpu_custom_call.1} parent=1 // pred_fallthru
      _
    // Predicated region
    $region6: #{tpu_custom_call.1} parent=1 // pred_check
      _
    $region7: #{tpu_custom_call.1} parent=1 // pred_check_branch
      %23 = sbr.rel (0) target = $region9
    $region8: #{tpu_custom_call.1} parent=1 // pred_region
      %s25 = ssub.s32 512, 512
      %26 = vsyncadd [#allocation6], %s25
      %s27 = sshll.u32 [#allocation5], 4
      %s28 = int_to_ptr.vmem [resolvable:$true] %s27
      %33 = dma.hbm_to_vmem [thread:$0]  %s1, 512, %s28, [#allocation6], 256, 256, 16
    $region9: #{tpu_custom_call.1} parent=1 // pred_fallthru
      _
    // Predicated region
    $region10: #{tpu_custom_call.1} parent=1 // pred_check
      _
    $region11: #{tpu_custom_call.1} parent=1 // pred_check_branch
      %35 = sbr.rel (0) target = $region13
    $region12: #{tpu_custom_call.1} parent=1 // pred_region
      %36 = dma.done [#allocation3], 4096
    $region13: #{tpu_custom_call.1} parent=1 // pred_fallthru
      _
    // Predicated region
    $region14: #{tpu_custom_call.1} parent=1 // pred_check
      _
    $region15: #{tpu_custom_call.1} parent=1 // pred_check_branch
      %38 = sbr.rel (0) target = $region17
    $region16: #{tpu_custom_call.1} parent=1 // pred_region
      %39 = dma.done [#allocation6], 512
    $region17: #{tpu_custom_call.1} parent=1 // pred_fallthru
      _
    %v40 = vld [vmem:[#allocation2] sm:$0xff]
    %v41 = vld [vmem:[#allocation2 + $0x8] sm:$0xff]
    %v42 = vld [vmem:[#allocation2 + $0x10] sm:$0xff]
    %v43 = vld [vmem:[#allocation2 + $0x18] sm:$0xff]
    %v44 = vld [vmem:[#allocation2 + $0x20] sm:$0xff]
    %v45 = vld [vmem:[#allocation2 + $0x28] sm:$0xff]
    %v46 = vld [vmem:[#allocation2 + $0x30] sm:$0xff]
    %v47 = vld [vmem:[#allocation2 + $0x38] sm:$0xff]
    %v48 = vld [vmem:[#allocation2 + $0x40] sm:$0xff]
    %v49 = vld [vmem:[#allocation2 + $0x48] sm:$0xff]
    %v50 = vld [vmem:[#allocation2 + $0x50] sm:$0xff]
    %v51 = vld [vmem:[#allocation2 + $0x58] sm:$0xff]
    %v52 = vld [vmem:[#allocation2 + $0x60] sm:$0xff]
    %v53 = vld [vmem:[#allocation2 + $0x68] sm:$0xff]
    %v54 = vld [vmem:[#allocation2 + $0x70] sm:$0xff]
    %v55 = vld [vmem:[#allocation2 + $0x78] sm:$0xff]
    %v56 = vld [vmem:[#allocation2 + $0x80] sm:$0xff]
    %v57 = vld [vmem:[#allocation2 + $0x88] sm:$0xff]
    %v58 = vld [vmem:[#allocation2 + $0x90] sm:$0xff]
    %v59 = vld [vmem:[#allocation2 + $0x98] sm:$0xff]
    %v60 = vld [vmem:[#allocation2 + $0xa0] sm:$0xff]
    %v61 = vld [vmem:[#allocation2 + $0xa8] sm:$0xff]
    %v62 = vld [vmem:[#allocation2 + $0xb0] sm:$0xff]
    %v63 = vld [vmem:[#allocation2 + $0xb8] sm:$0xff]
    %v64 = vld [vmem:[#allocation2 + $0xc0] sm:$0xff]
    %v65 = vld [vmem:[#allocation2 + $0xc8] sm:$0xff]
    %v66 = vld [vmem:[#allocation2 + $0xd0] sm:$0xff]
    %v67 = vld [vmem:[#allocation2 + $0xd8] sm:$0xff]
    %v68 = vld [vmem:[#allocation2 + $0xe0] sm:$0xff]
    %v69 = vld [vmem:[#allocation2 + $0xe8] sm:$0xff]
    %v70 = vld [vmem:[#allocation2 + $0xf0] sm:$0xff]
    %v71 = vld [vmem:[#allocation2 + $0xf8] sm:$0xff]
    %v72 = vld [vmem:[#allocation5] sm:$0xff]
    %v73 = vld [vmem:[#allocation5 + $0x8] sm:$0xff]
    %v74 = vld [vmem:[#allocation5 + $0x10] sm:$0xff]
    %v75 = vld [vmem:[#allocation5 + $0x18] sm:$0xff]
    %v76 = vmul.f32 %v40, %v40
    %v77 = vmul.f32 %v41, %v41
    %v78 = vmul.f32 %v42, %v42
    %v79 = vmul.f32 %v43, %v43
    %v80 = vmul.f32 %v44, %v44
    %v81 = vmul.f32 %v45, %v45
    %v82 = vmul.f32 %v46, %v46
    %v83 = vmul.f32 %v47, %v47
    %v84 = vmul.f32 %v48, %v48
    %v85 = vmul.f32 %v49, %v49
    %v86 = vmul.f32 %v50, %v50
    %v87 = vmul.f32 %v51, %v51
    %v88 = vmul.f32 %v52, %v52
    %v89 = vmul.f32 %v53, %v53
    %v90 = vmul.f32 %v54, %v54
    %v91 = vmul.f32 %v55, %v55
    %v92 = vmul.f32 %v56, %v56
    %v93 = vmul.f32 %v57, %v57
    %v94 = vmul.f32 %v58, %v58
    %v95 = vmul.f32 %v59, %v59
    %v96 = vmul.f32 %v60, %v60
    %v97 = vmul.f32 %v61, %v61
    %v98 = vmul.f32 %v62, %v62
    %v99 = vmul.f32 %v63, %v63
    %v100 = vmul.f32 %v64, %v64
    %v101 = vmul.f32 %v65, %v65
    %v102 = vmul.f32 %v66, %v66
    %v103 = vmul.f32 %v67, %v67
    %v104 = vmul.f32 %v68, %v68
    %v105 = vmul.f32 %v69, %v69
    %v106 = vmul.f32 %v70, %v70
    %v107 = vmul.f32 %v71, %v71
    %v108 = vadd.f32 %v76, %v77
    %109 = vadd.xlane.f32.xlu0 %v108
    %v110 = vpop.xlane.xlu0 %109
    %v111 = vadd.f32 %v78, %v79
    %112 = vadd.xlane.f32.xlu0 %v111
    %v113 = vpop.xlane.xlu0 %112
    %v114 = vadd.f32 %v80, %v81
    %115 = vadd.xlane.f32.xlu0 %v114
    %v116 = vpop.xlane.xlu0 %115
    %v117 = vadd.f32 %v82, %v83
    %118 = vadd.xlane.f32.xlu0 %v117
    %v119 = vpop.xlane.xlu0 %118
    %v120 = vadd.f32 %v84, %v85
    %121 = vadd.xlane.f32.xlu0 %v120
    %v122 = vpop.xlane.xlu0 %121
    %v123 = vadd.f32 %v86, %v87
    %124 = vadd.xlane.f32.xlu0 %v123
    %v125 = vpop.xlane.xlu0 %124
    %v126 = vadd.f32 %v88, %v89
    %127 = vadd.xlane.f32.xlu0 %v126
    %v128 = vpop.xlane.xlu0 %127
    %v129 = vadd.f32 %v90, %v91
    %130 = vadd.xlane.f32.xlu0 %v129
    %v131 = vpop.xlane.xlu0 %130
    %v132 = vadd.f32 %v92, %v93
    %133 = vadd.xlane.f32.xlu0 %v132
    %v134 = vpop.xlane.xlu0 %133
    %v135 = vadd.f32 %v94, %v95
    %136 = vadd.xlane.f32.xlu0 %v135
    %v137 = vpop.xlane.xlu0 %136
    %v138 = vadd.f32 %v96, %v97
    %139 = vadd.xlane.f32.xlu0 %v138
    %v140 = vpop.xlane.xlu0 %139
    %v141 = vadd.f32 %v98, %v99
    %142 = vadd.xlane.f32.xlu0 %v141
    %v143 = vpop.xlane.xlu0 %142
    %v144 = vadd.f32 %v100, %v101
    %145 = vadd.xlane.f32.xlu0 %v144
    %v146 = vpop.xlane.xlu0 %145
    %v147 = vadd.f32 %v102, %v103
    %148 = vadd.xlane.f32.xlu0 %v147
    %v149 = vpop.xlane.xlu0 %148
    %v150 = vadd.f32 %v104, %v105
    %151 = vadd.xlane.f32.xlu0 %v150
    %v152 = vpop.xlane.xlu0 %151
    %v153 = vadd.f32 %v106, %v107
    %154 = vadd.xlane.f32.xlu0 %v153
    %v155 = vpop.xlane.xlu0 %154
    %v156 = vmax.f32 %v110, 1e-24
    %v157 = vmax.f32 %v113, 1e-24
    %v158 = vmax.f32 %v116, 1e-24
    %v159 = vmax.f32 %v119, 1e-24
    %v160 = vmax.f32 %v122, 1e-24
    %v161 = vmax.f32 %v125, 1e-24
    %v162 = vmax.f32 %v128, 1e-24
    %v163 = vmax.f32 %v131, 1e-24
    %v164 = vmax.f32 %v134, 1e-24
    %v165 = vmax.f32 %v137, 1e-24
    %v166 = vmax.f32 %v140, 1e-24
    %v167 = vmax.f32 %v143, 1e-24
    %v168 = vmax.f32 %v146, 1e-24
    %v169 = vmax.f32 %v149, 1e-24
    %v170 = vmax.f32 %v152, 1e-24
    %v171 = vmax.f32 %v155, 1e-24
    %v172 = vrsqrt.pop %v156
    %v173 = vrsqrt.pop %v157
    %v174 = vrsqrt.pop %v158
    %v175 = vrsqrt.pop %v159
    %v176 = vrsqrt.pop %v160
    %v177 = vrsqrt.pop %v161
    %v178 = vrsqrt.pop %v162
    %v179 = vrsqrt.pop %v163
    %v180 = vrsqrt.pop %v164
    %v181 = vrsqrt.pop %v165
    %v182 = vrsqrt.pop %v166
    %v183 = vrsqrt.pop %v167
    %v184 = vrsqrt.pop %v168
    %v185 = vrsqrt.pop %v169
    %v186 = vrsqrt.pop %v170
    %v187 = vrsqrt.pop %v171
    %v188 = vmul.f32 %v40, %v172
    %v189 = vmul.f32 %v41, %v172
    %v190 = vmul.f32 %v42, %v173
    %v191 = vmul.f32 %v43, %v173
    %v192 = vmul.f32 %v44, %v174
    %v193 = vmul.f32 %v45, %v174
    %v194 = vmul.f32 %v46, %v175
    %v195 = vmul.f32 %v47, %v175
    %v196 = vmul.f32 %v48, %v176
    %v197 = vmul.f32 %v49, %v176
    %v198 = vmul.f32 %v50, %v177
    %v199 = vmul.f32 %v51, %v177
    %v200 = vmul.f32 %v52, %v178
    %v201 = vmul.f32 %v53, %v178
    %v202 = vmul.f32 %v54, %v179
    %v203 = vmul.f32 %v55, %v179
    %v204 = vmul.f32 %v56, %v180
    %v205 = vmul.f32 %v57, %v180
    %v206 = vmul.f32 %v58, %v181
    %v207 = vmul.f32 %v59, %v181
    %v208 = vmul.f32 %v60, %v182
    %v209 = vmul.f32 %v61, %v182
    %v210 = vmul.f32 %v62, %v183
    %v211 = vmul.f32 %v63, %v183
    %v212 = vmul.f32 %v64, %v184
    %v213 = vmul.f32 %v65, %v184
    %v214 = vmul.f32 %v66, %v185
    %v215 = vmul.f32 %v67, %v185
    %v216 = vmul.f32 %v68, %v186
    %v217 = vmul.f32 %v69, %v186
    %v218 = vmul.f32 %v70, %v187
    %v219 = vmul.f32 %v71, %v187
    %v220 = vmul.f32 %v72, %v72
    %v221 = vmul.f32 %v73, %v73
    %v222 = vmul.f32 %v74, %v74
    %v223 = vmul.f32 %v75, %v75
    %v224 = vadd.f32 %v220, %v221
    %225 = vadd.xlane.f32.xlu0 %v224
    %v226 = vpop.xlane.xlu0 %225
    %v227 = vadd.f32 %v222, %v223
    %228 = vadd.xlane.f32.xlu0 %v227
    %v229 = vpop.xlane.xlu0 %228
    %v230 = vmax.f32 %v226, 1e-24
    %v231 = vmax.f32 %v229, 1e-24
    %v232 = vrsqrt.pop %v230
    %v233 = vrsqrt.pop %v231
    %v234 = vmul.f32 %v72, %v232
    %v235 = vmul.f32 %v73, %v232
    %v236 = vmul.f32 %v74, %v233
    %v237 = vmul.f32 %v75, %v233
    %238 = vmatprep.subr.mxu0 0.0
    %239 = vmatpush1.xpose.msra.mxu0 0.0
    %240 = vmatprep.subr.mxu0 0.0
    %241 = vmatpush1.xpose.msra.mxu0 0.0
    %242 = vmatprep.subr.mxu0 0.0
    %243 = vmatpush1.xpose.msra.mxu0 0.0
    %244 = vmatprep.subr.mxu0 0.0
    %245 = vmatpush1.xpose.msra.mxu0 0.0
    %246 = vmatprep.subr.mxu0 0.0
    %247 = vmatpush1.xpose.msra.mxu0 0.0
    %248 = vmatprep.subr.mxu0 0.0
    %249 = vmatpush1.xpose.msra.mxu0 0.0
    %250 = vmatprep.subr.mxu0 0.0
    %251 = vmatpush1.xpose.msra.mxu0 0.0
    %252 = vmatprep.subr.mxu0 0.0
    %253 = vmatpush1.xpose.msra.mxu0 0.0
    %254 = vmatprep.subr.mxu0 0.0
    %255 = vmatpush1.xpose.msra.mxu0 0.0
    %256 = vmatprep.subr.mxu0 0.0
    %257 = vmatpush1.xpose.msra.mxu0 0.0
    %258 = vmatprep.subr.mxu0 0.0
    %259 = vmatpush1.xpose.msra.mxu0 0.0
    %260 = vmatprep.subr.mxu0 0.0
    %261 = vmatpush1.xpose.msra.mxu0 0.0
    %262 = vmatprep.subr.mxu0 0.0
    %263 = vmatpush1.xpose.msra.mxu0 0.0
    %264 = vmatprep.subr.mxu0 0.0
    %265 = vmatpush1.xpose.msra.mxu0 0.0
    %266 = vmatprep.subr.mxu0 %v237
    %267 = vmatpush1.xpose.msra.mxu0 %v236
    %268 = vmatprep.subr.mxu0 %v235
    %269 = vmatpush1.xpose.msra.mxu0 %v234
    %270 = vmatprep.subr.mxu0 0.0
    %271 = vmatpush2.xpose.msra.mxu0 0.0
    %272 = vmatprep.subr.mxu0 0.0
    %273 = vmatpush2.xpose.msra.mxu0 0.0
    %274 = vmatprep.subr.mxu0 0.0
    %275 = vmatpush2.xpose.msra.mxu0 0.0
    %276 = vmatprep.subr.mxu0 0.0
    %277 = vmatpush2.xpose.msra.mxu0 0.0
    %278 = vmatprep.subr.mxu0 0.0
    %279 = vmatpush2.xpose.msra.mxu0 0.0
    %280 = vmatprep.subr.mxu0 0.0
    %281 = vmatpush2.xpose.msra.mxu0 0.0
    %282 = vmatprep.subr.mxu0 0.0
    %283 = vmatpush2.xpose.msra.mxu0 0.0
    %284 = vmatprep.subr.mxu0 0.0
    %285 = vmatpush2.xpose.msra.mxu0 0.0
    %286 = vmatprep.subr.mxu0 0.0
    %287 = vmatpush2.xpose.msra.mxu0 0.0
    %288 = vmatprep.subr.mxu0 0.0
    %289 = vmatpush2.xpose.msra.mxu0 0.0
    %290 = vmatprep.subr.mxu0 0.0
    %291 = vmatpush2.xpose.msra.mxu0 0.0
    %292 = vmatprep.subr.mxu0 0.0
    %293 = vmatpush2.xpose.msra.mxu0 0.0
    %294 = vmatprep.subr.mxu0 0.0
    %295 = vmatpush2.xpose.msra.mxu0 0.0
    %296 = vmatprep.subr.mxu0 0.0
    %297 = vmatpush2.xpose.msra.mxu0 0.0
    %298 = vmatprep.subr.mxu0 0.0
    %299 = vmatpush2.xpose.msra.mxu0 0.0
    %300 = vmatprep.subr.mxu0 0.0
    %301 = vmatpush2.xpose.msra.mxu0 0.0
    %302 = vmatprep.mubr.f32.mxu0 %v189
    %303 = vmatmul.mubr.f32.gmra.mxu0 %v188
    %v304 = vpop.f32.mrf.mxu0
    %v305 = vadd.f32 0.0, %v304
    %v306 = vpop.f32.mrf.mxu0
    %307 = vmatprep.mubr.f32.mxu0 %v191
    %308 = vmatmul.mubr.f32.gmra.mxu0 %v190
    %v309 = vpop.f32.mrf.mxu0
    %v310 = vadd.f32 0.0, %v309
    %v311 = vpop.f32.mrf.mxu0
    %312 = vmatprep.mubr.f32.mxu0 %v193
    %313 = vmatmul.mubr.f32.gmra.mxu0 %v192
    %v314 = vpop.f32.mrf.mxu0
    %v315 = vadd.f32 0.0, %v314
    %v316 = vpop.f32.mrf.mxu0
    %317 = vmatprep.mubr.f32.mxu0 %v195
    %318 = vmatmul.mubr.f32.gmra.mxu0 %v194
    %v319 = vpop.f32.mrf.mxu0
    %v320 = vadd.f32 0.0, %v319
    %v321 = vpop.f32.mrf.mxu0
    %322 = vmatprep.mubr.f32.mxu0 %v197
    %323 = vmatmul.mubr.f32.gmra.mxu0 %v196
    %v324 = vpop.f32.mrf.mxu0
    %v325 = vadd.f32 0.0, %v324
    %v326 = vpop.f32.mrf.mxu0
    %327 = vmatprep.mubr.f32.mxu0 %v199
    %328 = vmatmul.mubr.f32.gmra.mxu0 %v198
    %v329 = vpop.f32.mrf.mxu0
    %v330 = vadd.f32 0.0, %v329
    %v331 = vpop.f32.mrf.mxu0
    %332 = vmatprep.mubr.f32.mxu0 %v201
    %333 = vmatmul.mubr.f32.gmra.mxu0 %v200
    %v334 = vpop.f32.mrf.mxu0
    %v335 = vadd.f32 0.0, %v334
    %v336 = vpop.f32.mrf.mxu0
    %337 = vmatprep.mubr.f32.mxu0 %v203
    %338 = vmatmul.mubr.f32.gmra.mxu0 %v202
    %v339 = vpop.f32.mrf.mxu0
    %v340 = vadd.f32 0.0, %v339
    %v341 = vpop.f32.mrf.mxu0
    %342 = vmatprep.mubr.f32.mxu0 %v205
    %343 = vmatmul.mubr.f32.gmra.mxu0 %v204
    %v344 = vpop.f32.mrf.mxu0
    %v345 = vadd.f32 0.0, %v344
    %v346 = vpop.f32.mrf.mxu0
    %347 = vmatprep.mubr.f32.mxu0 %v207
    %348 = vmatmul.mubr.f32.gmra.mxu0 %v206
    %v349 = vpop.f32.mrf.mxu0
    %v350 = vadd.f32 0.0, %v349
    %v351 = vpop.f32.mrf.mxu0
    %352 = vmatprep.mubr.f32.mxu0 %v209
    %353 = vmatmul.mubr.f32.gmra.mxu0 %v208
    %v354 = vpop.f32.mrf.mxu0
    %v355 = vadd.f32 0.0, %v354
    %v356 = vpop.f32.mrf.mxu0
    %357 = vmatprep.mubr.f32.mxu0 %v211
    %358 = vmatmul.mubr.f32.gmra.mxu0 %v210
    %v359 = vpop.f32.mrf.mxu0
    %v360 = vadd.f32 0.0, %v359
    %v361 = vpop.f32.mrf.mxu0
    %362 = vmatprep.mubr.f32.mxu0 %v213
    %363 = vmatmul.mubr.f32.gmra.mxu0 %v212
    %v364 = vpop.f32.mrf.mxu0
    %v365 = vadd.f32 0.0, %v364
    %v366 = vpop.f32.mrf.mxu0
    %367 = vmatprep.mubr.f32.mxu0 %v215
    %368 = vmatmul.mubr.f32.gmra.mxu0 %v214
    %v369 = vpop.f32.mrf.mxu0
    %v370 = vadd.f32 0.0, %v369
    %v371 = vpop.f32.mrf.mxu0
    %372 = vmatprep.mubr.f32.mxu0 %v217
    %373 = vmatmul.mubr.f32.gmra.mxu0 %v216
    %v374 = vpop.f32.mrf.mxu0
    %v375 = vadd.f32 0.0, %v374
    %v376 = vpop.f32.mrf.mxu0
    %377 = vmatprep.mubr.f32.mxu0 %v219
    %378 = vmatmul.mubr.f32.gmra.mxu0 %v218
    %v379 = vpop.f32.mrf.mxu0
    %v380 = vadd.f32 0.0, %v379
    %v381 = vpop.f32.mrf.mxu0
    %382 = vdwg.mxu0
    %v383 = vmul.f32 %v305, %v305
    %v384 = vmul.f32 %v310, %v310
    %v385 = vmul.f32 %v315, %v315
    %v386 = vmul.f32 %v320, %v320
    %v387 = vmul.f32 %v325, %v325
    %v388 = vmul.f32 %v330, %v330
    %v389 = vmul.f32 %v335, %v335
    %v390 = vmul.f32 %v340, %v340
    %v391 = vmul.f32 %v345, %v345
    %v392 = vmul.f32 %v350, %v350
    %v393 = vmul.f32 %v355, %v355
    %v394 = vmul.f32 %v360, %v360
    %v395 = vmul.f32 %v365, %v365
    %v396 = vmul.f32 %v370, %v370
    %v397 = vmul.f32 %v375, %v375
    %v398 = vmul.f32 %v380, %v380
    %vm399 = vcmask 130048
    %v400 = vsel %vm399, %v383, 0.0
    %401 = vadd.xlane.f32.xlu0 %v400
    %v402 = vpop.xlane.xlu0 %401
    %v403 = vsel %vm399, %v384, 0.0
    %404 = vadd.xlane.f32.xlu0 %v403
    %v405 = vpop.xlane.xlu0 %404
    %v406 = vsel %vm399, %v385, 0.0
    %407 = vadd.xlane.f32.xlu0 %v406
    %v408 = vpop.xlane.xlu0 %407
    %v409 = vsel %vm399, %v386, 0.0
    %410 = vadd.xlane.f32.xlu0 %v409
    %v411 = vpop.xlane.xlu0 %410
    %v412 = vsel %vm399, %v387, 0.0
    %413 = vadd.xlane.f32.xlu0 %v412
    %v414 = vpop.xlane.xlu0 %413
    %v415 = vsel %vm399, %v388, 0.0
    %416 = vadd.xlane.f32.xlu0 %v415
    %v417 = vpop.xlane.xlu0 %416
    %v418 = vsel %vm399, %v389, 0.0
    %419 = vadd.xlane.f32.xlu0 %v418
    %v420 = vpop.xlane.xlu0 %419
    %v421 = vsel %vm399, %v390, 0.0
    %422 = vadd.xlane.f32.xlu0 %v421
    %v423 = vpop.xlane.xlu0 %422
    %v424 = vsel %vm399, %v391, 0.0
    %425 = vadd.xlane.f32.xlu0 %v424
    %v426 = vpop.xlane.xlu0 %425
    %v427 = vsel %vm399, %v392, 0.0
    %428 = vadd.xlane.f32.xlu0 %v427
    %v429 = vpop.xlane.xlu0 %428
    %v430 = vsel %vm399, %v393, 0.0
    %431 = vadd.xlane.f32.xlu0 %v430
    %v432 = vpop.xlane.xlu0 %431
    %v433 = vsel %vm399, %v394, 0.0
    %434 = vadd.xlane.f32.xlu0 %v433
    %v435 = vpop.xlane.xlu0 %434
    %v436 = vsel %vm399, %v395, 0.0
    %437 = vadd.xlane.f32.xlu0 %v436
    %v438 = vpop.xlane.xlu0 %437
    %v439 = vsel %vm399, %v396, 0.0
    %440 = vadd.xlane.f32.xlu0 %v439
    %v441 = vpop.xlane.xlu0 %440
    %v442 = vsel %vm399, %v397, 0.0
    %443 = vadd.xlane.f32.xlu0 %v442
    %v444 = vpop.xlane.xlu0 %443
    %v445 = vsel %vm399, %v398, 0.0
    %446 = vadd.xlane.f32.xlu0 %v445
    %v447 = vpop.xlane.xlu0 %446
    %v448 = vmax.f32 %v402, 1e-24
    %v449 = vmax.f32 %v405, 1e-24
    %v450 = vmax.f32 %v408, 1e-24
    %v451 = vmax.f32 %v411, 1e-24
    %v452 = vmax.f32 %v414, 1e-24
    %v453 = vmax.f32 %v417, 1e-24
    %v454 = vmax.f32 %v420, 1e-24
    %v455 = vmax.f32 %v423, 1e-24
    %v456 = vmax.f32 %v426, 1e-24
    %v457 = vmax.f32 %v429, 1e-24
    %v458 = vmax.f32 %v432, 1e-24
    %v459 = vmax.f32 %v435, 1e-24
    %v460 = vmax.f32 %v438, 1e-24
    %v461 = vmax.f32 %v441, 1e-24
    %v462 = vmax.f32 %v444, 1e-24
    %v463 = vmax.f32 %v447, 1e-24
    %v464 = vrsqrt.pop %v448
    %v465 = vrsqrt.pop %v449
    %v466 = vrsqrt.pop %v450
    %v467 = vrsqrt.pop %v451
    %v468 = vrsqrt.pop %v452
    %v469 = vrsqrt.pop %v453
    %v470 = vrsqrt.pop %v454
    %v471 = vrsqrt.pop %v455
    %v472 = vrsqrt.pop %v456
    %v473 = vrsqrt.pop %v457
    %v474 = vrsqrt.pop %v458
    %v475 = vrsqrt.pop %v459
    %v476 = vrsqrt.pop %v460
    %v477 = vrsqrt.pop %v461
    %v478 = vrsqrt.pop %v462
    %v479 = vrsqrt.pop %v463
    %v480 = vmul.f32 %v305, %v464
    %v481 = vmul.f32 %v310, %v465
    %v482 = vmul.f32 %v315, %v466
    %v483 = vmul.f32 %v320, %v467
    %v484 = vmul.f32 %v325, %v468
    %v485 = vmul.f32 %v330, %v469
    %v486 = vmul.f32 %v335, %v470
    %v487 = vmul.f32 %v340, %v471
    %v488 = vmul.f32 %v345, %v472
    %v489 = vmul.f32 %v350, %v473
    %v490 = vmul.f32 %v355, %v474
    %v491 = vmul.f32 %v360, %v475
    %v492 = vmul.f32 %v365, %v476
    %v493 = vmul.f32 %v370, %v477
    %v494 = vmul.f32 %v375, %v478
    %v495 = vmul.f32 %v380, %v479
    %v497 = vsel %vm399, %v480, 0
    %v500 = vsel %vm399, %v481, 0
    %v503 = vsel %vm399, %v482, 0
    %v506 = vsel %vm399, %v483, 0
    %v509 = vsel %vm399, %v484, 0
    %v512 = vsel %vm399, %v485, 0
    %v515 = vsel %vm399, %v486, 0
    %v518 = vsel %vm399, %v487, 0
    %v521 = vsel %vm399, %v488, 0
    %v524 = vsel %vm399, %v489, 0
    %v527 = vsel %vm399, %v490, 0
    %v530 = vsel %vm399, %v491, 0
    %v533 = vsel %vm399, %v492, 0
    %v536 = vsel %vm399, %v493, 0
    %v539 = vsel %vm399, %v494, 0
    %v542 = vsel %vm399, %v495, 0
    %544 = vmatprep.subr.mxu0 0.0
    %545 = vmatpush1.xpose.msra.mxu0 %v542
    %546 = vmatprep.subr.mxu0 0.0
    %547 = vmatpush1.xpose.msra.mxu0 %v539
    %548 = vmatprep.subr.mxu0 0.0
    %549 = vmatpush1.xpose.msra.mxu0 %v536
    %550 = vmatprep.subr.mxu0 0.0
    %551 = vmatpush1.xpose.msra.mxu0 %v533
    %552 = vmatprep.subr.mxu0 0.0
    %553 = vmatpush1.xpose.msra.mxu0 %v530
    %554 = vmatprep.subr.mxu0 0.0
    %555 = vmatpush1.xpose.msra.mxu0 %v527
    %556 = vmatprep.subr.mxu0 0.0
    %557 = vmatpush1.xpose.msra.mxu0 %v524
    %558 = vmatprep.subr.mxu0 0.0
    %559 = vmatpush1.xpose.msra.mxu0 %v521
    %560 = vmatprep.subr.mxu0 0.0
    %561 = vmatpush1.xpose.msra.mxu0 %v518
    %562 = vmatprep.subr.mxu0 0.0
    %563 = vmatpush1.xpose.msra.mxu0 %v515
    %564 = vmatprep.subr.mxu0 0.0
    %565 = vmatpush1.xpose.msra.mxu0 %v512
    %566 = vmatprep.subr.mxu0 0.0
    %567 = vmatpush1.xpose.msra.mxu0 %v509
    %568 = vmatprep.subr.mxu0 0.0
    %569 = vmatpush1.xpose.msra.mxu0 %v506
    %570 = vmatprep.subr.mxu0 0.0
    %571 = vmatpush1.xpose.msra.mxu0 %v503
    %572 = vmatprep.subr.mxu0 0.0
    %573 = vmatpush1.xpose.msra.mxu0 %v500
    %574 = vmatprep.subr.mxu0 0.0
    %575 = vmatpush1.xpose.msra.mxu0 %v497
    %576 = vmatprep.subr.mxu0 0.0
    %577 = vmatpush2.xpose.msra.mxu0 0.0
    %578 = vmatprep.subr.mxu0 0.0
    %579 = vmatpush2.xpose.msra.mxu0 0.0
    %580 = vmatprep.subr.mxu0 0.0
    %581 = vmatpush2.xpose.msra.mxu0 0.0
    %582 = vmatprep.subr.mxu0 0.0
    %583 = vmatpush2.xpose.msra.mxu0 0.0
    %584 = vmatprep.subr.mxu0 0.0
    %585 = vmatpush2.xpose.msra.mxu0 0.0
    %586 = vmatprep.subr.mxu0 0.0
    %587 = vmatpush2.xpose.msra.mxu0 0.0
    %588 = vmatprep.subr.mxu0 0.0
    %589 = vmatpush2.xpose.msra.mxu0 0.0
    %590 = vmatprep.subr.mxu0 0.0
    %591 = vmatpush2.xpose.msra.mxu0 0.0
    %592 = vmatprep.subr.mxu0 0.0
    %593 = vmatpush2.xpose.msra.mxu0 0.0
    %594 = vmatprep.subr.mxu0 0.0
    %595 = vmatpush2.xpose.msra.mxu0 0.0
    %596 = vmatprep.subr.mxu0 0.0
    %597 = vmatpush2.xpose.msra.mxu0 0.0
    %598 = vmatprep.subr.mxu0 0.0
    %599 = vmatpush2.xpose.msra.mxu0 0.0
    %600 = vmatprep.subr.mxu0 0.0
    %601 = vmatpush2.xpose.msra.mxu0 0.0
    %602 = vmatprep.subr.mxu0 0.0
    %603 = vmatpush2.xpose.msra.mxu0 0.0
    %604 = vmatprep.subr.mxu0 0.0
    %605 = vmatpush2.xpose.msra.mxu0 0.0
    %606 = vmatprep.subr.mxu0 0.0
    %607 = vmatpush2.xpose.msra.mxu0 0.0
    %608 = vmatprep.mubr.f32.mxu0 0.0
    %609 = vmatmul.mubr.f32.gmra.mxu0 %v497
    %v610 = vpop.f32.mrf.mxu0
    %v611 = vadd.f32 0.0, %v610
    %v612 = vpop.f32.mrf.mxu0
    %613 = vmatprep.mubr.f32.mxu0 0.0
    %614 = vmatmul.mubr.f32.gmra.mxu0 %v500
    %v615 = vpop.f32.mrf.mxu0
    %v616 = vadd.f32 0.0, %v615
    %v617 = vpop.f32.mrf.mxu0
    %618 = vmatprep.mubr.f32.mxu0 0.0
    %619 = vmatmul.mubr.f32.gmra.mxu0 %v503
    %v620 = vpop.f32.mrf.mxu0
    %v621 = vadd.f32 0.0, %v620
    %v622 = vpop.f32.mrf.mxu0
    %623 = vmatprep.mubr.f32.mxu0 0.0
    %624 = vmatmul.mubr.f32.gmra.mxu0 %v506
    %v625 = vpop.f32.mrf.mxu0
    %v626 = vadd.f32 0.0, %v625
    %v627 = vpop.f32.mrf.mxu0
    %628 = vmatprep.mubr.f32.mxu0 0.0
    %629 = vmatmul.mubr.f32.gmra.mxu0 %v509
    %v630 = vpop.f32.mrf.mxu0
    %v631 = vadd.f32 0.0, %v630
    %v632 = vpop.f32.mrf.mxu0
    %633 = vmatprep.mubr.f32.mxu0 0.0
    %634 = vmatmul.mubr.f32.gmra.mxu0 %v512
    %v635 = vpop.f32.mrf.mxu0
    %v636 = vadd.f32 0.0, %v635
    %v637 = vpop.f32.mrf.mxu0
    %638 = vmatprep.mubr.f32.mxu0 0.0
    %639 = vmatmul.mubr.f32.gmra.mxu0 %v515
    %v640 = vpop.f32.mrf.mxu0
    %v641 = vadd.f32 0.0, %v640
    %v642 = vpop.f32.mrf.mxu0
    %643 = vmatprep.mubr.f32.mxu0 0.0
    %644 = vmatmul.mubr.f32.gmra.mxu0 %v518
    %v645 = vpop.f32.mrf.mxu0
    %v646 = vadd.f32 0.0, %v645
    %v647 = vpop.f32.mrf.mxu0
    %648 = vmatprep.mubr.f32.mxu0 0.0
    %649 = vmatmul.mubr.f32.gmra.mxu0 %v521
    %v650 = vpop.f32.mrf.mxu0
    %v651 = vadd.f32 0.0, %v650
    %v652 = vpop.f32.mrf.mxu0
    %653 = vmatprep.mubr.f32.mxu0 0.0
    %654 = vmatmul.mubr.f32.gmra.mxu0 %v524
    %v655 = vpop.f32.mrf.mxu0
    %v656 = vadd.f32 0.0, %v655
    %v657 = vpop.f32.mrf.mxu0
    %658 = vmatprep.mubr.f32.mxu0 0.0
    %659 = vmatmul.mubr.f32.gmra.mxu0 %v527
    %v660 = vpop.f32.mrf.mxu0
    %v661 = vadd.f32 0.0, %v660
    %v662 = vpop.f32.mrf.mxu0
    %663 = vmatprep.mubr.f32.mxu0 0.0
    %664 = vmatmul.mubr.f32.gmra.mxu0 %v530
    %v665 = vpop.f32.mrf.mxu0
    %v666 = vadd.f32 0.0, %v665
    %v667 = vpop.f32.mrf.mxu0
    %668 = vmatprep.mubr.f32.mxu0 0.0
    %669 = vmatmul.mubr.f32.gmra.mxu0 %v533
    %v670 = vpop.f32.mrf.mxu0
    %v671 = vadd.f32 0.0, %v670
    %v672 = vpop.f32.mrf.mxu0
    %673 = vmatprep.mubr.f32.mxu0 0.0
    %674 = vmatmul.mubr.f32.gmra.mxu0 %v536
    %v675 = vpop.f32.mrf.mxu0
    %v676 = vadd.f32 0.0, %v675
    %v677 = vpop.f32.mrf.mxu0
    %678 = vmatprep.mubr.f32.mxu0 0.0
    %679 = vmatmul.mubr.f32.gmra.mxu0 %v539
    %v680 = vpop.f32.mrf.mxu0
    %v681 = vadd.f32 0.0, %v680
    %v682 = vpop.f32.mrf.mxu0
    %683 = vmatprep.mubr.f32.mxu0 0.0
    %684 = vmatmul.mubr.f32.gmra.mxu0 %v542
    %v685 = vpop.f32.mrf.mxu0
    %v686 = vadd.f32 0.0, %v685
    %v687 = vpop.f32.mrf.mxu0
    %688 = vdwg.mxu0
    %689 = vst [vmem:[#allocation7] sm:$0xff] %v611
    %690 = vst [vmem:[#allocation7 + $0x8] sm:$0xff] %v616
    %691 = vst [vmem:[#allocation7 + $0x10] sm:$0xff] %v621
    %692 = vst [vmem:[#allocation7 + $0x18] sm:$0xff] %v626
    %693 = vst [vmem:[#allocation7 + $0x20] sm:$0xff] %v631
    %694 = vst [vmem:[#allocation7 + $0x28] sm:$0xff] %v636
    %695 = vst [vmem:[#allocation7 + $0x30] sm:$0xff] %v641
    %696 = vst [vmem:[#allocation7 + $0x38] sm:$0xff] %v646
    %697 = vst [vmem:[#allocation7 + $0x40] sm:$0xff] %v651
    %698 = vst [vmem:[#allocation7 + $0x48] sm:$0xff] %v656
    %699 = vst [vmem:[#allocation7 + $0x50] sm:$0xff] %v661
    %700 = vst [vmem:[#allocation7 + $0x58] sm:$0xff] %v666
    %701 = vst [vmem:[#allocation7 + $0x60] sm:$0xff] %v671
    %702 = vst [vmem:[#allocation7 + $0x68] sm:$0xff] %v676
    %703 = vst [vmem:[#allocation7 + $0x70] sm:$0xff] %v681
    %704 = vst [vmem:[#allocation7 + $0x78] sm:$0xff] %v686
    // Predicated region
    $region18: #{tpu_custom_call.1} parent=1 // pred_check
      _
    $region19: #{tpu_custom_call.1} parent=1 // pred_check_branch
      %706 = sbr.rel (0) target = $region21
    $region20: #{tpu_custom_call.1} parent=1 // pred_region
      %s708 = ssub.s32 2048, 2048
      %709 = vsyncadd [#allocation4], %s708
      %s710 = sshll.u32 [#allocation7], 4
      %s711 = int_to_ptr.vmem [resolvable:$true] %s710
      %716 = dma.vmem_to_hbm [thread:$0]  %s711, 2048, %s2, [#allocation4], 128, 128, 8
    $region21: #{tpu_custom_call.1} parent=1 // pred_fallthru
      _
    // Predicated region
    $region22: #{tpu_custom_call.1} parent=1 // pred_check
      _
    $region23: #{tpu_custom_call.1} parent=1 // pred_check_branch
      %718 = sbr.rel (0) target = $region25
    $region24: #{tpu_custom_call.1} parent=1 // pred_region
      %719 = dma.done [#allocation4], 2048
    $region25: #{tpu_custom_call.1} parent=1 // pred_fallthru
      _
    %720 = vsyncpa [#allocation3], 1
    %721 = vsyncpa [#allocation6], 1
    %722 = vsyncpa [#allocation4], 1

</llo_original>
